<compile_context>
chip_gen: v6e
topology: v6e:2x2x1
jax: 0.10.0
libtpu: 0.0.40
codegen_flags: <defaults>
</compile_context>

<pallas_src>
import functools
import sys

import jax
import jax.numpy as jnp
from jax import lax
from jax.experimental import pallas as pl
from jax.experimental.pallas import tpu as pltpu

LANE = 128     # vreg lane width
SUBLANE = 8    # f32 sublanes per vreg


def _round_up(x, m):
    return ((x + m - 1) // m) * m


def _tpu_block_config():
    """Per-generation (max_block_rows, num_chunks)."""
    try:
        kind = jax.devices()[0].device_kind.lower()
    except Exception:
        kind = ""
    if "v6" in kind:            # v6e: 1 TC, 128 MiB VMEM, ~1.4 TB/s HBM
        return 8192, 1
    if "v5p" in kind:           # v5p: 1 TC, large VMEM
        return 8192, 1
    if "v5" in kind:            # v5e / v5 lite: 16 MiB scoped-VMEM default
        return 4096, 1
    if "7" in kind:             # v7x: 2 TCs/chip, 64 MiB VMEM/TC, ~3.2 TB/s
        return 8192, 2
    return 4096, 1              # conservative default


MAX_BLOCK_ROWS, NUM_CHUNKS = _tpu_block_config()


def _probe_complex_bitcast():
    """Check once (tiny eager compile) that complex64 -> f32 bitcast works."""
    try:
        out = jax.jit(lambda a: lax.bitcast_convert_type(a, jnp.float32))(
            jnp.zeros((1,), jnp.complex64))
        out = jax.block_until_ready(out)
        return out.shape == (1, 2)
    except Exception:
        return False


_COMPLEX_BITCAST_OK = _probe_complex_bitcast()
if not _COMPLEX_BITCAST_OK:
    print("WARNING: complex64->float32 bitcast unsupported on this JAX build; "
          "falling back to real/imag stacking (adds one extra HBM pass).",
          file=sys.stderr)


def _flatten_f32(x):
    """Flatten to a 1-D float32 stream; complex64 -> interleaved [re, im] view."""
    x = jnp.asarray(x)
    if jnp.iscomplexobj(x):
        if _COMPLEX_BITCAST_OK:
            y = lax.bitcast_convert_type(x, jnp.float32)  # (..., 2), zero-copy
        else:
            # TODO(synk): fallback path doubles operand HBM traffic; sum of
            # squared diffs is invariant to the re/im ordering so it is exact.
            y = jnp.stack([jnp.real(x).astype(jnp.float32),
                           jnp.imag(x).astype(jnp.float32)], axis=-1)
    else:
        y = x.astype(jnp.float32)
    return y.reshape(-1)


def _cmse_kernel(x_ref, t_ref, out_ref, *, steps, block_rows, rows_total,
                 needs_mask, unroll):
    """Accumulate lane-wise partial sums of (x - t)^2 into a resident (1,8,128) block."""
    c = pl.program_id(0)
    i = pl.program_id(1)

    @pl.when(i == 0)
    def _init():
        out_ref[...] = jnp.zeros_like(out_ref)

    n_groups = block_rows // SUBLANE
    block_start = (c * steps + i) * block_rows  # logical (unclamped) row offset

    def accumulate(masked):
        row_iota = lax.broadcasted_iota(jnp.int32, (SUBLANE, LANE), 0)

        def body(g, acc):
            r0 = pl.multiple_of(g * SUBLANE, SUBLANE)
            d = x_ref[pl.ds(r0, SUBLANE), :] - t_ref[pl.ds(r0, SUBLANE), :]
            sq = d * d
            if masked:
                valid = (block_start + g * SUBLANE + row_iota) < rows_total
                sq = jnp.where(valid, sq, 0.0)
            return acc + sq

        return lax.fori_loop(0, n_groups, body,
                             jnp.zeros((SUBLANE, LANE), jnp.float32),
                             unroll=unroll)

    if not needs_mask:
        out_ref[...] = out_ref[...] + accumulate(False)[None]
    else:
        is_partial = block_start + block_rows > rows_total

        @pl.when(jnp.logical_not(is_partial))
        def _full():
            out_ref[...] = out_ref[...] + accumulate(False)[None]

        @pl.when(is_partial)
        def _partial():
            out_ref[...] = out_ref[...] + accumulate(True)[None]


@functools.partial(jax.jit, static_argnames=("max_block_rows", "num_chunks"))
def complex_mse(inp, tgt, *, max_block_rows=None, num_chunks=None):
    """ComplexMSELoss.forward: mean((Re in - Re tgt)^2) + mean((Im in - Im tgt)^2)."""
    if inp.shape != tgt.shape:
        raise ValueError(f"shape mismatch: {inp.shape} vs {tgt.shape}")

    mbr = MAX_BLOCK_ROWS if max_block_rows is None else max_block_rows
    nch_req = NUM_CHUNKS if num_chunks is None else num_chunks

    n_complex = inp.size  # normalization: sum_all_sq / N == mse_real + mse_imag

    x = _flatten_f32(inp)
    t = _flatten_f32(tgt)
    total = x.shape[0]  # static under jit

    rows_total = total // LANE
    tail_len = total - rows_total * LANE

    # <128-element ragged tail: trivial plain-JAX sum (no HBM pad pass).
    tail_sum = jnp.float32(0.0)
    if tail_len:
        dt = x[rows_total * LANE:] - t[rows_total * LANE:]
        tail_sum = jnp.sum(dt * dt)

    if rows_total == 0:
        return tail_sum / jnp.float32(n_complex)

    # Offset-0 static slice + reshape: aliasable, no extra HBM traffic.
    xm = x[: rows_total * LANE].reshape(rows_total, LANE)
    tm = t[: rows_total * LANE].reshape(rows_total, LANE)

    # Static tiling plan (all Python ints at trace time).
    block_rows = min(mbr, _round_up(rows_total, SUBLANE))
    n_blocks = pl.cdiv(rows_total, block_rows)
    nch = nch_req if n_blocks >= nch_req else 1
    steps = pl.cdiv(n_blocks, nch)
    logical_blocks = nch * steps
    needs_mask = (rows_total % block_rows != 0) or (logical_blocks != n_blocks)

    # Keep every DMA in-bounds: over-shooting grid steps re-read the last real
    # block (clamped index) and the kernel masks their contribution to zero.
    if logical_blocks == n_blocks:
        in_idx = lambda c, i: (c * steps + i, 0)
    else:
        last_blk = n_blocks - 1
        in_idx = lambda c, i: (jnp.minimum(c * steps + i, last_blk), 0)

    in_spec = pl.BlockSpec((block_rows, LANE), in_idx)
    out_spec = pl.BlockSpec((1, SUBLANE, LANE), lambda c, i: (c, 0, 0))

    # Explicit VMEM budget: 2 inputs x 2 double-buffers x block + temp headroom.
    block_bytes = block_rows * LANE * 4
    vmem_limit = 6 * block_bytes + (4 << 20)

    n_groups = block_rows // SUBLANE
    unroll = min(8, n_groups)

    kern = functools.partial(_cmse_kernel, steps=steps, block_rows=block_rows,
                             rows_total=rows_total, needs_mask=needs_mask,
                             unroll=unroll)

    cost = pl.CostEstimate(
        flops=3 * rows_total * LANE,   # sub + mul + add per f32 element
        transcendentals=0,
        bytes_accessed=2 * rows_total * LANE * 4 + nch * SUBLANE * LANE * 4,
    )

    partials = pl.pallas_call(
        kern,
        out_shape=jax.ShapeDtypeStruct((nch, SUBLANE, LANE), jnp.float32),
        grid_spec=pltpu.PrefetchScalarGridSpec(
            num_scalar_prefetch=0,
            grid=(nch, steps),
            in_specs=[in_spec, in_spec],
            out_specs=out_spec,
        ),
        compiler_params=pltpu.CompilerParams(
            # chunk axis -> parallel (v7x: 2 TensorCores); reduction axis -> arbitrary.
            dimension_semantics=("parallel", "arbitrary"),
            vmem_limit_bytes=vmem_limit,
        ),
        cost_estimate=cost,
    )(xm, tm)

    # Single tiny final cross-lane / cross-chunk reduce in the wrapper.
    return (jnp.sum(partials) + tail_sum) / jnp.float32(n_complex)


class LossUnfolding:
    """JAX/Pallas port of LossUnfolding. Supervised branch only (see TODOs)."""

    def __init__(self, signal_max_power=100.0, noise_power=1e-08):
        self.signal_max_power = signal_max_power
        self.noise_power = noise_power

    def __call__(self, H, V, w, V_init=None, mode='super', target_iters=20,
                 V_opt=None):
        if mode == 'unsuper':
            # TODO(synk): WSR() is not defined in the reference source; the
            # unsupervised branch (-WSR(H, V, w, ...)) cannot be reproduced.
            raise NotImplementedError("WSR() not provided in reference source")
        if V_opt is None:
            # TODO(synk): FastFP() is not defined in the reference source; the
            # optimal precoder V_opt must be supplied externally.
            raise NotImplementedError("FastFP() not provided in reference source")
        return complex_mse(V, V_opt)


if __name__ == "__main__":
    key = jax.random.PRNGKey(0)
    ks = jax.random.split(key, 11)

    def cplx(kr, ki, shape):
        return (jax.random.normal(kr, shape, jnp.float32)
                + 1j * jax.random.normal(ki, shape, jnp.float32)).astype(jnp.complex64)

    def ref_cmse(a, b):
        return (jnp.mean((jnp.real(a) - jnp.real(b)) ** 2)
                + jnp.mean((jnp.imag(a) - jnp.imag(b)) ** 2))

    # Test 1: supervised LossUnfolding branch, lane/block-aligned shapes.
    B, K, Nr, Nt, d = 2, 4, 8, 16, 8
    H = cplx(ks[0], ks[1], (B, K, Nr, Nt))
    V = cplx(ks[2], ks[3], (B, K, Nt, d))
    V_opt = cplx(ks[4], ks[5], (B, K, Nt, d))
    w = jax.random.uniform(ks[6], (B, K), jnp.float32)

    loss_mod = LossUnfolding(signal_max_power=100.0, noise_power=1e-8)
    loss = jax.block_until_ready(loss_mod(H, V, w, mode='super', V_opt=V_opt))
    ref = ref_cmse(V, V_opt)
    assert jnp.allclose(loss, ref, rtol=1e-5, atol=1e-6), (loss, ref)

    # Test 2: unaligned shape -> in-kernel partial-block masking + <128-elem tail.
    a2 = cplx(ks[7], ks[8], (3, 5, 41))
    b2 = cplx(ks[9], ks[10], (3, 5, 41))
    got2 = jax.block_until_ready(complex_mse(a2, b2))
    ref2 = ref_cmse(a2, b2)
    assert jnp.allclose(got2, ref2, rtol=1e-5, atol=1e-6), (got2, ref2)

    # Test 3: multi-block, 2-chunk grid with index-map clamp + overshoot masking
    # (tiny block override keeps data small while exercising the large-array path).
    a3 = cplx(ks[1], ks[3], (150, 128))
    b3 = cplx(ks[5], ks[7], (150, 128))
    got3 = jax.block_until_ready(complex_mse(a3, b3, max_block_rows=64, num_chunks=2))
    ref3 = ref_cmse(a3, b3)
    assert jnp.allclose(got3, ref3, rtol=1e-5, atol=1e-6), (got3, ref3)

    print("KERNEL_OK")
</pallas_src>

<mosaic_0001>
module attributes {stable_mosaic.version = 11 : i64} {
  func.func @_cmse_kernel(%arg0: i32, %arg1: i32, %arg2: memref<16x128xf32, #tpu.memory_space<vmem>>, %arg3: memref<16x128xf32, #tpu.memory_space<vmem>>, %arg4: memref<1x8x128xf32, #tpu.memory_space<vmem>>) attributes {dimension_semantics = [#tpu.dimension_semantics<parallel>, #tpu.dimension_semantics<arbitrary>], iteration_bounds = array<i64: 1, 1>, scalar_prefetch = 0 : i64, scratch_operands = 0 : i64, tpu.core_type = #tpu.core_type<tc>, window_params = [{transform_indices = @transform_0, window_bounds = array<i64: 16, 128>}, {transform_indices = @transform_1, window_bounds = array<i64: 16, 128>}, {transform_indices = @transform_2, window_bounds = array<i64: 1, 8, 128>}]} {
    %c0_i32 = arith.constant 0 : i32
    %0 = arith.cmpi eq, %arg1, %c0_i32 : i32
    %1 = arith.extui %0 : i1 to i32
    %c0_i32_0 = arith.constant 0 : i32
    %2 = arith.cmpi ne, %1, %c0_i32_0 : i32
    scf.if %2 {
      %cst_12 = arith.constant 0.000000e+00 : f32
      %26 = vector.broadcast %cst_12 : f32 to vector<1x8x128xf32>
      %c0_13 = arith.constant 0 : index
      %c0_14 = arith.constant 0 : index
      %c0_15 = arith.constant 0 : index
      %27 = vector.load %arg4[%c0_13, %c0_14, %c0_15] : memref<1x8x128xf32, #tpu.memory_space<vmem>>, vector<1x8x128xf32>
      tpu.vector_store %arg4[%c0_13, %c0_14, %c0_15], %26 {strides = array<i32>} : memref<1x8x128xf32, #tpu.memory_space<vmem>>, vector<1x8x128xf32>,
    } else {
    }
    %c0 = arith.constant 0 : index
    %c0_1 = arith.constant 0 : index
    %c0_2 = arith.constant 0 : index
    %3 = vector.load %arg4[%c0, %c0_1, %c0_2] : memref<1x8x128xf32, #tpu.memory_space<vmem>>, vector<1x8x128xf32>
    %cst = arith.constant 0.000000e+00 : f32
    %4 = vector.broadcast %cst : f32 to vector<8x128xf32>
    %c0_i32_3 = arith.constant 0 : i32
    %c8_i32 = arith.constant 8 : i32
    %5 = arith.muli %c0_i32_3, %c8_i32 : i32
    %6 = tpu.assume_multiple %5, 8 : i32
    %7 = arith.index_cast %6 : i32 to index
    %c0_4 = arith.constant 0 : index
    %8 = vector.load %arg2[%7, %c0_4] : memref<16x128xf32, #tpu.memory_space<vmem>>, vector<8x128xf32>
    %9 = arith.index_cast %6 : i32 to index
    %c0_5 = arith.constant 0 : index
    %10 = vector.load %arg3[%9, %c0_5] : memref<16x128xf32, #tpu.memory_space<vmem>>, vector<8x128xf32>
    %11 = arith.subf %8, %10 : vector<8x128xf32>
    %12 = arith.mulf %11, %11 : vector<8x128xf32>
    %13 = arith.addf %4, %12 : vector<8x128xf32>
    %c1_i32 = arith.constant 1 : i32
    %c8_i32_6 = arith.constant 8 : i32
    %14 = arith.muli %c1_i32, %c8_i32_6 : i32
    %15 = tpu.assume_multiple %14, 8 : i32
    %16 = arith.index_cast %15 : i32 to index
    %c0_7 = arith.constant 0 : index
    %17 = vector.load %arg2[%16, %c0_7] : memref<16x128xf32, #tpu.memory_space<vmem>>, vector<8x128xf32>
    %18 = arith.index_cast %15 : i32 to index
    %c0_8 = arith.constant 0 : index
    %19 = vector.load %arg3[%18, %c0_8] : memref<16x128xf32, #tpu.memory_space<vmem>>, vector<8x128xf32>
    %20 = arith.subf %17, %19 : vector<8x128xf32>
    %21 = arith.mulf %20, %20 : vector<8x128xf32>
    %22 = arith.addf %13, %21 : vector<8x128xf32>
    %c2_i32 = arith.constant 2 : i32
    %23 = vector.shape_cast %22 : vector<8x128xf32> to vector<1x8x128xf32>
    %24 = arith.addf %3, %23 : vector<1x8x128xf32>
    %c0_9 = arith.constant 0 : index
    %c0_10 = arith.constant 0 : index
    %c0_11 = arith.constant 0 : index
    %25 = vector.load %arg4[%c0_9, %c0_10, %c0_11] : memref<1x8x128xf32, #tpu.memory_space<vmem>>, vector<1x8x128xf32>
    tpu.vector_store %arg4[%c0_9, %c0_10, %c0_11], %24 {strides = array<i32>} : memref<1x8x128xf32, #tpu.memory_space<vmem>>, vector<1x8x128xf32>,
    return
  }
  func.func @transform_0(%arg0: i32, %arg1: i32) -> (i32, i32) {
    %c1_i32 = arith.constant 1 : i32
    %0 = arith.muli %arg0, %c1_i32 : i32
    %1 = arith.addi %0, %arg1 : i32
    %c0_i32 = arith.constant 0 : i32
    %c0_i32_0 = arith.constant 0 : i32
    return %1, %c0_i32 : i32, i32
  }
  func.func @transform_1(%arg0: i32, %arg1: i32) -> (i32, i32) {
    %c1_i32 = arith.constant 1 : i32
    %0 = arith.muli %arg0, %c1_i32 : i32
    %1 = arith.addi %0, %arg1 : i32
    %c0_i32 = arith.constant 0 : i32
    %c0_i32_0 = arith.constant 0 : i32
    return %1, %c0_i32 : i32, i32
  }
  func.func @transform_2(%arg0: i32, %arg1: i32) -> (i32, i32, i32) {
    %c0_i32 = arith.constant 0 : i32
    %c0_i32_0 = arith.constant 0 : i32
    %c0_i32_1 = arith.constant 0 : i32
    return %arg0, %c0_i32, %c0_i32_0 : i32, i32, i32
  }
}

</mosaic_0001>

<llo_original>
// kernel: custom-call.1
$region0: #{custom-call.1}
  %s0 = inlined_call_operand.hbm [shape: c64[2,4,16,8], index: 0, kind: input, shape index: {}]
  %s1 = inlined_call_operand.vmem [shape: f32[2,4,16,8], index: 1, kind: output, shape index: {}]
  %s2 = scalar_lea.hbm %s0, 1024
  $region1: #{custom-call.1} parent=0
    #allocation0 [shape = 's32[1]{0}', space=sflag, size = 0x4, scoped, tag = 'scoped memory for custom-call.1']
    %3 = vsyncpa [#allocation0], 0
    %s4 = sshll.u32 %s1, 4
    %s5 = int_to_ptr.vmem [resolvable:$true] %s4
    %7 = dma.hbm_to_vmem [thread:$0]  %s2, 1024, %s5, [#allocation0]
    %8 = dma.done [#allocation0], 1024
    %9 = vsyncpa [#allocation0], 1

// kernel: custom-call
$region0: #{custom-call}
  %s0 = inlined_call_operand.hbm [shape: c64[2,4,16,8], index: 0, kind: input, shape index: {}]
  %s1 = inlined_call_operand.vmem [shape: f32[2,4,16,8], index: 1, kind: output, shape index: {}]
  $region1: #{custom-call} parent=0
    #allocation0 [shape = 's32[1]{0}', space=sflag, size = 0x4, scoped, tag = 'scoped memory for custom-call']
    %2 = vsyncpa [#allocation0], 0
    %s3 = sshll.u32 %s1, 4
    %s4 = int_to_ptr.vmem [resolvable:$true] %s3
    %6 = dma.hbm_to_vmem [thread:$0]  %s0, 1024, %s4, [#allocation0]
    %7 = dma.done [#allocation0], 1024
    %8 = vsyncpa [#allocation0], 1

// kernel: complex_mse.1
$region0: #{complex_mse.1}
  #allocation0 [shape = 'u32[]', space=smem, size = 0x4, offset = 0x4, fixed_abs, tag = 'smem constant byte address 0x4 - core index']
  #allocation1 [shape = 'u32[144,128]{1,0:T(1,128)}', space=vmem, size = 0x12000, scoped, tag = 'internal scratch']
  %s0 = inlined_call_operand.vmem [shape: f32[16,128], index: 0, kind: input, shape index: {}]
  %s1 = inlined_call_operand.vmem [shape: f32[16,128], index: 1, kind: input, shape index: {}]
  %s2 = inlined_call_operand.vmem [shape: f32[1,8,128], index: 2, kind: output, shape index: {}]
  %s3 = sld [smem:[#allocation0]]
  $region22: #{complex_mse.1} parent=0
    _
  %s5 = ssub.s32 1, %s3
  %s6 = scalar_select 0, %s5, %s3
  // Predicated region
  $region2: #{complex_mse.1} parent=0 // pred_check
    _
  $region3: #{complex_mse.1} parent=0 // pred_check_branch
    %8 = sbr.rel (0) target = $region5
  $region4: #{complex_mse.1} parent=0 // pred_region
    %s9 = sadd.s32 0, 0
    %s10 = smul.u32 2, %s9
    %p11 = scmp.lt.s32.totalorder %s10, 1
    %s12 = scalar_select %p11, %s10, 1
    %s13 = smul.addr %s12, 8
    %s14 = scalar_lea.vmem %s0, %s13
    %s15 = sadd.s32 0, 0
    %s16 = smul.u32 2, %s15
  $region5: #{complex_mse.1} parent=0 // pred_fallthru
    _
  // Predicated region
  $region6: #{complex_mse.1} parent=0 // pred_check
    _
  $region7: #{complex_mse.1} parent=0 // pred_check_branch
    %18 = sbr.rel (0) target = $region9
  $region8: #{complex_mse.1} parent=0 // pred_region
    %s19 = sadd.s32 0, 0
    %s20 = smul.u32 2, %s19
    %p21 = scmp.lt.s32.totalorder %s20, 1
    %s22 = scalar_select %p21, %s20, 1
    %s23 = smul.addr %s22, 8
    %s24 = scalar_lea.vmem %s1, %s23
    %s25 = sadd.s32 0, 0
    %s26 = smul.u32 2, %s25
  $region9: #{complex_mse.1} parent=0 // pred_fallthru
    _
  %s27 = sadd.s32 0, 0
  %s28 = smul.u32 2, %s27
  %p29 = scmp.lt.s32.totalorder %s28, 1
  %s30 = scalar_select %p29, %s28, 1
  %s31 = smul.addr %s30, 8
  %s32 = scalar_lea.vmem %s0, %s31
  %s33 = sadd.s32 0, 0
  %s34 = smul.u32 2, %s33
  %p35 = scmp.lt.s32.totalorder %s34, 1
  %s36 = scalar_select %p35, %s34, 1
  %s37 = smul.addr %s36, 8
  %s38 = scalar_lea.vmem %s1, %s37
  %s39 = sadd.s32 0, 0
  %s40 = smul.u32 2, %s39
  %p41 = scmp.lt.s32.totalorder %s40, 1
  %s42 = scalar_select %p41, %s40, 1
  %s43 = smul.addr %s42, 8
  %s44 = scalar_lea.vmem %s0, %s43
  %s45 = sadd.s32 0, 0
  %s46 = smul.u32 2, %s45
  %s47 = sadd.s32 0, 0
  %s48 = smul.u32 2, %s47
  %p49 = scmp.lt.s32.totalorder %s48, 1
  %s50 = scalar_select %p49, %s48, 1
  %s51 = smul.addr %s50, 8
  %s52 = scalar_lea.vmem %s1, %s51
  %s53 = sadd.s32 0, 0
  %s54 = smul.u32 2, %s53
  %p55 = scmp.eq.s32.totalorder 0, 0
  // Predicated region
  $region10: #{complex_mse.1} parent=0 // pred_check
    %p56 = pneg %p55
  $region11: #{complex_mse.1} parent=0 // pred_check_branch
    %58 = sbr.rel (%p56) target = $region13
  $region12: #{complex_mse.1} parent=0 // pred_region
    %59 = vst [vmem:[%s2] sm:$0xff] 0.0
  $region13: #{complex_mse.1} parent=0 // pred_fallthru
    _
  %v60 = vld [vmem:[%s2] sm:$0xff]
  %v61 = vld [vmem:[%s44] sm:$0xff]
  %v62 = vld [vmem:[%s52] sm:$0xff]
  %v63 = vsub.f32 %v61, %v62
  %v64 = vmul.f32 %v63, %v63
  %v65 = vadd.f32 %v64, 0.0
  %s66 = scalar_lea.vmem %s44, 8
  %v67 = vld [vmem:[%s66] sm:$0xff]
  %s68 = scalar_lea.vmem %s52, 8
  %v69 = vld [vmem:[%s68] sm:$0xff]
  %v70 = vsub.f32 %v67, %v69
  %v71 = vmul.f32 %v70, %v70
  %v72 = vadd.f32 %v65, %v71
  %v73 = vadd.f32 %v60, %v72
  %74 = vst [vmem:[%s2] sm:$0xff] %v73
  // Predicated region
  $region14: #{complex_mse.1} parent=0 // pred_check
    _
  $region15: #{complex_mse.1} parent=0 // pred_check_branch
    %76 = sbr.rel (0) target = $region17
  $region16: #{complex_mse.1} parent=0 // pred_region
    _
  $region17: #{complex_mse.1} parent=0 // pred_fallthru
    _
  // Predicated region
  $region18: #{complex_mse.1} parent=0 // pred_check
    _
  $region19: #{complex_mse.1} parent=0 // pred_check_branch
    %78 = sbr.rel (0) target = $region21
  $region20: #{complex_mse.1} parent=0 // pred_region
    _
  $region21: #{complex_mse.1} parent=0 // pred_fallthru
    _

</llo_original>
